<compile_context>
chip_gen: v6e
topology: v6e:2x2x1
jax: 0.10.0
libtpu: 0.0.40
codegen_flags: <defaults>
</compile_context>

<pallas_src>
import functools

import jax
import jax.numpy as jnp
from jax.experimental import pallas as pl
from jax.experimental.pallas import tpu as pltpu


def _round_up(x, n):
    return (x + n - 1) // n * n


def _invariant_spec(block_shape, index_map):
    """BlockSpec for inputs whose block never changes along the time axis.

    Single-buffering (pl.Buffered(1)) reclaims the second pipeline buffer,
    which is pure VMEM waste for grid-invariant blocks. Falls back silently
    if this jax build's BlockSpec has no pipeline_mode kwarg.
    """
    try:
        return pl.BlockSpec(block_shape, index_map, pipeline_mode=pl.Buffered(1))
    except (TypeError, AttributeError):
        return pl.BlockSpec(block_shape, index_map)


def _choose_time_chunk(L, cap):
    """Pick T <= cap minimizing dead padded serial steps, then #grid chunks.

    A padded timestep is fully serial, fully wasted wall-clock; a grid chunk
    costs ~0.35us of grid+DMA overhead. Weight dead steps ~2x a chunk.
    """
    cap = max(1, min(cap, L))
    best_t, best_cost = 1, None
    for t in range(1, cap + 1):
        n_chunks = -(-L // t)
        waste = n_chunks * t - L
        cost = 2 * waste + n_chunks
        if best_cost is None or cost < best_cost or (cost == best_cost and t > best_t):
            best_t, best_cost = t, cost
    return best_t


def _nbrc_recurrent_kernel(xp_ref, h0_ref, wh_ref, out_ref, h_scratch,
                           *, T, mp, matmul_dtype):
    """One grid step processes T timesteps for one batch shard.

    xp_ref : (T, Bblk, 3*mp) matmul_dtype  precomputed [ia | ic | io] projections
    h0_ref : (Bblk, mp)      f32           initial hidden state for this shard
    wh_ref : (mp, 2*mp)      matmul_dtype  fused [Wha | Whc] (pre-transposed)
    out_ref: (T, Bblk, mp)   f32           per-step hidden states
    h_scratch: (Bblk, mp)    f32           hidden-state carry across time chunks
    """
    # NOTE: the grid is (batch shards, time chunks); the time axis MUST remain
    # the innermost "arbitrary" axis so chunks of one batch shard execute in
    # order and h_scratch correctly carries the recurrence between them.
    @pl.when(pl.program_id(1) == 0)
    def _():
        h_scratch[...] = h0_ref[...]

    wh = wh_ref[...]  # resident fused hidden weight (one load per chunk)

    def step(i, h):
        # Upcast xp once per step; all gate math stays f32 (VPU/EUP).
        xp_t = xp_ref[i].astype(jnp.float32)                  # (Bblk, 3*mp)
        # Single fused h-matmul on the critical path: bf16 operands, f32 acc.
        hh = jnp.dot(h.astype(matmul_dtype), wh,
                     preferred_element_type=jnp.float32)      # (Bblk, 2*mp)
        a = 1.0 + jnp.tanh(xp_t[:, 0:mp] + hh[:, 0:mp])
        # sigmoid(z) = 0.5*(tanh(0.5 z) + 1): 1 EUP pass instead of exp+recip.
        zc = xp_t[:, mp:2 * mp] + hh[:, mp:2 * mp]
        c = 0.5 * (jnp.tanh(0.5 * zc) + 1.0)
        h_new = c * h + (1.0 - c) * jnp.tanh(xp_t[:, 2 * mp:3 * mp] + a * h)
        out_ref[i] = h_new.astype(out_ref.dtype)
        return h_new

    # Cap unrolling to bound vreg/live-range pressure (64 vregs total) while
    # keeping enough LLO visibility to overlap MXU / EUP / VPU work.
    unroll = T if T <= 8 else 8
    h_scratch[...] = jax.lax.fori_loop(0, T, step, h_scratch[...], unroll=unroll)


@functools.partial(jax.jit,
                   static_argnames=("matmul_dtype", "time_chunk",
                                    "vmem_budget_bytes"))
def nbrc_forward(u, h0, w_ia, w_ha, w_ic, w_hc, w_io,
                 *, matmul_dtype=jnp.bfloat16, time_chunk=32,
                 vmem_budget_bytes=48 * 1024 * 1024):
    """u: (B, L, in_sz) batch-first (PyTorch convention). h0: (B, mem_sz).
    w_*: PyTorch nn.Linear weights, shape (out=mem_sz, in), y = x @ W^T.

    Returns (h_all (B, L, mem_sz), h_last (B, 1, mem_sz)) like the module.

    matmul_dtype=bf16 puts the serial h@Wh matmul and the xp stream on the
    native MXU/HBM path; gate math and the h carry stay f32. Use f32 for
    bit-tight verification (bf16 rounding compounds over long sequences --
    validate at your real L before relying on it).
    """
    B, L, in_sz = u.shape
    m = h0.shape[-1]
    f32 = jnp.float32
    itemsize = jnp.dtype(matmul_dtype).itemsize

    # Hardware-aligned padded sizes (zero-padding is exact for this cell:
    # padded lanes give a=1, c=0.5, tanh(0)=0 so padded h stays exactly 0).
    mp = _round_up(m, 128)           # lane dim
    bp = _round_up(B, 8)             # sublane dim

    # Megacore batch split only when per-step work is throughput-bound; small
    # batches are latency-bound (each core still pays L * per-step latency).
    # bp % 32 keeps b_blk a multiple of 16 (bf16 sublane tile) when split.
    nb = 2 if (bp % 32 == 0 and (bp // 2) * mp >= 16 * 256) else 1
    b_blk = bp // nb

    # ---- VMEM budget -> time-chunk cap (safe for v7x's 64 MiB VMEM) --------
    # fixed: fused Wh + h0 (counted double-buffered, conservative) + h scratch
    fixed = (mp * 2 * mp * itemsize) * 2 + (b_blk * mp * 4) * 2 + b_blk * mp * 4
    # per timestep: xp (matmul dtype, 2 bufs) + out (f32, 2 bufs)
    per_t = (b_blk * 3 * mp * itemsize) * 2 + (b_blk * mp * 4) * 2
    slack = 2 * 1024 * 1024
    cap = max(1, (vmem_budget_bytes - fixed - slack) // per_t)
    cap = int(min(cap, time_chunk, L))
    T = _choose_time_chunk(L, cap)   # minimizes dead padded serial steps
    Lp = _round_up(L, T)
    vmem_limit = int(max(fixed + per_t * T, 16 * 1024 * 1024) + (4 << 20))

    # ---- fused / transposed / zero-padded weights ---------------------------
    w_i = jnp.zeros((in_sz, 3 * mp), f32)                    # [Wia | Wic | Wio]
    w_i = w_i.at[:, 0:m].set(jnp.transpose(w_ia).astype(f32))
    w_i = w_i.at[:, mp:mp + m].set(jnp.transpose(w_ic).astype(f32))
    w_i = w_i.at[:, 2 * mp:2 * mp + m].set(jnp.transpose(w_io).astype(f32))

    w_h = jnp.zeros((mp, 2 * mp), f32)                       # [Wha | Whc]
    w_h = w_h.at[0:m, 0:m].set(jnp.transpose(w_ha).astype(f32))
    w_h = w_h.at[0:m, mp:mp + m].set(jnp.transpose(w_hc).astype(f32))
    w_h = w_h.astype(matmul_dtype)

    # ---- hoisted input projections (one big matmul, off the recurrence) ----
    u_t = jnp.transpose(u, (1, 0, 2)).astype(f32)            # (L, B, in)
    u_t = jnp.pad(u_t, ((0, Lp - L), (0, bp - B), (0, 0)))
    xp = jnp.dot(u_t.reshape(Lp * bp, in_sz).astype(matmul_dtype),
                 w_i.astype(matmul_dtype),
                 preferred_element_type=f32).astype(matmul_dtype)
    xp = xp.reshape(Lp, bp, 3 * mp)                          # dominant HBM stream

    h0p = jnp.zeros((bp, mp), f32).at[:B, :m].set(h0.astype(f32))

    kernel = functools.partial(_nbrc_recurrent_kernel,
                               T=T, mp=mp, matmul_dtype=matmul_dtype)

    # TODO(synk): on v7x, pinning Wh in the MXU weight registers across the
    # chunk (pltpu.matmul_push_rhs / matmul_acc_lhs / matmul_pop) would remove
    # the per-step weight re-push; not implemented here.
    h_all = pl.pallas_call(
        kernel,
        out_shape=jax.ShapeDtypeStruct((Lp, bp, mp), f32),
        grid_spec=pltpu.PrefetchScalarGridSpec(
            num_scalar_prefetch=0,
            grid=(nb, Lp // T),                 # (batch shards, time chunks)
            in_specs=[
                pl.BlockSpec((T, b_blk, 3 * mp), lambda b, t: (t, b, 0)),   # xp
                _invariant_spec((b_blk, mp), lambda b, t: (b, 0)),          # h0
                _invariant_spec((mp, 2 * mp), lambda b, t: (0, 0)),         # Wh
            ],
            out_specs=pl.BlockSpec((T, b_blk, mp), lambda b, t: (t, b, 0)),
            scratch_shapes=[pltpu.VMEM((b_blk, mp), f32)],
        ),
        compiler_params=pltpu.CompilerParams(
            # batch axis parallel (megacore); time axis is the sequential
            # recurrence and must stay innermost + "arbitrary".
            dimension_semantics=("parallel", "arbitrary"),
            vmem_limit_bytes=vmem_limit),
    )(xp, h0p, w_h)

    # Strip padding and return batch-first (module convention).
    h_all = jnp.transpose(h_all[:L, :B, :m], (1, 0, 2))      # (B, L, m)
    h_last = h_all[:, -1:, :]
    return h_all, h_last


def _nbrc_reference(u, h0, w_ia, w_ha, w_ic, w_hc, w_io):
    """Pure-JAX f32 reference matching the PyTorch module (for verification)."""
    def step(h, x):
        a = 1.0 + jnp.tanh(x @ w_ia.T + h @ w_ha.T)
        c = jax.nn.sigmoid(x @ w_ic.T + h @ w_hc.T)
        h_new = c * h + (1.0 - c) * jnp.tanh(x @ w_io.T + a * h)
        return h_new, h_new

    _, hs = jax.lax.scan(step, h0, jnp.transpose(u, (1, 0, 2)))
    hs = jnp.transpose(hs, (1, 0, 2))
    return hs, hs[:, -1:, :]


if __name__ == "__main__":
    B, L, in_sz, mem_sz = 2, 8, 4, 32

    key = jax.random.PRNGKey(0)
    ku, kia, kha, kic, khc, kio = jax.random.split(key, 6)

    u = jax.random.normal(ku, (B, L, in_sz), dtype=jnp.float32)
    h0 = jnp.zeros((B, mem_sz), dtype=jnp.float32)

    # Deterministic parameter init (nn.Linear weight shape: (out, in)).
    scale_in = 1.0 / jnp.sqrt(in_sz)
    scale_mem = 1.0 / jnp.sqrt(mem_sz)
    w_ia = jax.random.uniform(kia, (mem_sz, in_sz), minval=-scale_in, maxval=scale_in)
    w_ha = jax.random.uniform(kha, (mem_sz, mem_sz), minval=-scale_mem, maxval=scale_mem)
    w_ic = jax.random.uniform(kic, (mem_sz, in_sz), minval=-scale_in, maxval=scale_in)
    w_hc = jax.random.uniform(khc, (mem_sz, mem_sz), minval=-scale_mem, maxval=scale_mem)
    w_io = jax.random.uniform(kio, (mem_sz, in_sz), minval=-scale_in, maxval=scale_in)

    ref_all, ref_last = _nbrc_reference(u, h0, w_ia, w_ha, w_ic, w_hc, w_io)

    # f32 matmul path: tight check against the reference.
    h_all, h_last = nbrc_forward(u, h0, w_ia, w_ha, w_ic, w_hc, w_io,
                                 matmul_dtype=jnp.float32)
    jax.block_until_ready((h_all, h_last))
    assert h_all.shape == (B, L, mem_sz) and h_last.shape == (B, 1, mem_sz)
    assert jnp.allclose(h_all, ref_all, atol=1e-4, rtol=1e-4)
    assert jnp.allclose(h_last, ref_last, atol=1e-4, rtol=1e-4)

    # Default bf16 MXU path (f32 accumulation + f32 gate math): looser tolerance.
    h_all_bf, h_last_bf = nbrc_forward(u, h0, w_ia, w_ha, w_ic, w_hc, w_io)
    jax.block_until_ready((h_all_bf, h_last_bf))
    assert h_all_bf.shape == (B, L, mem_sz) and h_last_bf.shape == (B, 1, mem_sz)
    assert jnp.allclose(h_all_bf, ref_all, atol=3e-2, rtol=3e-2)
    assert jnp.allclose(h_last_bf, ref_last, atol=3e-2, rtol=3e-2)

    # TODO(synk): the module's mem=True branch (returning per-step a/c gate
    # histories) is not implemented; only the default forward path is.
    print("KERNEL_OK")
</pallas_src>

<mosaic_0001>
module attributes {stable_mosaic.version = 11 : i64} {
  func.func @_nbrc_recurrent_kernel(%arg0: i32, %arg1: i32, %arg2: memref<8x8x384xf32, #tpu.memory_space<vmem>>, %arg3: memref<8x128xf32, #tpu.memory_space<vmem>>, %arg4: memref<128x256xf32, #tpu.memory_space<vmem>>, %arg5: memref<8x8x128xf32, #tpu.memory_space<vmem>>, %arg6: memref<8x128xf32, #tpu.memory_space<vmem>>) attributes {dimension_semantics = [#tpu.dimension_semantics<parallel>, #tpu.dimension_semantics<arbitrary>], iteration_bounds = array<i64: 1, 1>, scalar_prefetch = 0 : i64, scratch_operands = 1 : i64, tpu.core_type = #tpu.core_type<tc>, window_params = [{transform_indices = @transform_0, window_bounds = array<i64: 8, 8, 384>}, {pipeline_mode = #tpu.pipeline_mode<synchronous>, transform_indices = @transform_1, window_bounds = array<i64: 8, 128>}, {pipeline_mode = #tpu.pipeline_mode<synchronous>, transform_indices = @transform_2, window_bounds = array<i64: 128, 256>}, {transform_indices = @transform_3, window_bounds = array<i64: 8, 8, 128>}]} {
    %c0_i32 = arith.constant 0 : i32
    %0 = arith.cmpi eq, %arg1, %c0_i32 : i32
    %1 = arith.extui %0 : i1 to i32
    %c0_i32_0 = arith.constant 0 : i32
    %2 = arith.cmpi ne, %1, %c0_i32_0 : i32
    scf.if %2 {
      %c0_86 = arith.constant 0 : index
      %c0_87 = arith.constant 0 : index
      %270 = vector.load %arg3[%c0_86, %c0_87] : memref<8x128xf32, #tpu.memory_space<vmem>>, vector<8x128xf32>
      %c0_88 = arith.constant 0 : index
      %c0_89 = arith.constant 0 : index
      %271 = vector.load %arg6[%c0_88, %c0_89] : memref<8x128xf32, #tpu.memory_space<vmem>>, vector<8x128xf32>
      tpu.vector_store %arg6[%c0_88, %c0_89], %270 {strides = array<i32>} : memref<8x128xf32, #tpu.memory_space<vmem>>, vector<8x128xf32>,
    } else {
    }
    %c0 = arith.constant 0 : index
    %c0_1 = arith.constant 0 : index
    %3 = vector.load %arg4[%c0, %c0_1] : memref<128x256xf32, #tpu.memory_space<vmem>>, vector<128x256xf32>
    %c0_2 = arith.constant 0 : index
    %c0_3 = arith.constant 0 : index
    %4 = vector.load %arg6[%c0_2, %c0_3] : memref<8x128xf32, #tpu.memory_space<vmem>>, vector<8x128xf32>
    %c0_i32_4 = arith.constant 0 : i32
    %5 = arith.index_cast %c0_i32_4 : i32 to index
    %c0_5 = arith.constant 0 : index
    %c0_6 = arith.constant 0 : index
    %6 = vector.load %arg2[%5, %c0_5, %c0_6] : memref<8x8x384xf32, #tpu.memory_space<vmem>>, vector<1x8x384xf32>
    %7 = vector.shape_cast %6 : vector<1x8x384xf32> to vector<8x384xf32>
    %cst = arith.constant dense<0.000000e+00> : vector<8x256xf32>
    %8 = tpu.matmul %4, %3, %cst {dimension_numbers = #tpu.dot_dimension_numbers<[1], [0], [0], [1], [0, 0, 1, 1], [], []>} : vector<8x128xf32>, vector<128x256xf32>, vector<8x256xf32> -> vector<8x256xf32>
    %9 = vector.extract_strided_slice %7 {offsets = [0, 0], sizes = [8, 128], strides = [1, 1]} : vector<8x384xf32> to vector<8x128xf32>
    %10 = vector.extract_strided_slice %8 {offsets = [0, 0], sizes = [8, 128], strides = [1, 1]} : vector<8x256xf32> to vector<8x128xf32>
    %11 = arith.addf %9, %10 : vector<8x128xf32>
    %12 = math.tanh %11 : vector<8x128xf32>
    %cst_7 = arith.constant 1.000000e+00 : f32
    %13 = vector.broadcast %cst_7 : f32 to vector<8x128xf32>
    %14 = arith.addf %13, %12 : vector<8x128xf32>
    %15 = vector.extract_strided_slice %7 {offsets = [0, 128], sizes = [8, 128], strides = [1, 1]} : vector<8x384xf32> to vector<8x128xf32>
    %16 = vector.extract_strided_slice %8 {offsets = [0, 128], sizes = [8, 128], strides = [1, 1]} : vector<8x256xf32> to vector<8x128xf32>
    %17 = arith.addf %15, %16 : vector<8x128xf32>
    %cst_8 = arith.constant 5.000000e-01 : f32
    %18 = vector.broadcast %cst_8 : f32 to vector<8x128xf32>
    %19 = arith.mulf %18, %17 : vector<8x128xf32>
    %20 = math.tanh %19 : vector<8x128xf32>
    %cst_9 = arith.constant 1.000000e+00 : f32
    %21 = vector.broadcast %cst_9 : f32 to vector<8x128xf32>
    %22 = arith.addf %20, %21 : vector<8x128xf32>
    %cst_10 = arith.constant 5.000000e-01 : f32
    %23 = vector.broadcast %cst_10 : f32 to vector<8x128xf32>
    %24 = arith.mulf %23, %22 : vector<8x128xf32>
    %25 = arith.mulf %24, %4 : vector<8x128xf32>
    %cst_11 = arith.constant 1.000000e+00 : f32
    %26 = vector.broadcast %cst_11 : f32 to vector<8x128xf32>
    %27 = arith.subf %26, %24 : vector<8x128xf32>
    %28 = vector.extract_strided_slice %7 {offsets = [0, 256], sizes = [8, 128], strides = [1, 1]} : vector<8x384xf32> to vector<8x128xf32>
    %29 = arith.mulf %14, %4 : vector<8x128xf32>
    %30 = arith.addf %28, %29 : vector<8x128xf32>
    %31 = math.tanh %30 : vector<8x128xf32>
    %32 = arith.mulf %27, %31 : vector<8x128xf32>
    %33 = arith.addf %25, %32 : vector<8x128xf32>
    %34 = arith.index_cast %c0_i32_4 : i32 to index
    %c0_12 = arith.constant 0 : index
    %c0_13 = arith.constant 0 : index
    %35 = vector.load %arg5[%34, %c0_12, %c0_13] : memref<8x8x128xf32, #tpu.memory_space<vmem>>, vector<1x8x128xf32>
    %36 = vector.shape_cast %35 : vector<1x8x128xf32> to vector<8x128xf32>
    %37 = vector.shape_cast %33 : vector<8x128xf32> to vector<1x8x128xf32>
    tpu.vector_store %arg5[%34, %c0_12, %c0_13], %37 {strides = array<i32>} : memref<8x8x128xf32, #tpu.memory_space<vmem>>, vector<1x8x128xf32>,
    %c1_i32 = arith.constant 1 : i32
    %38 = arith.index_cast %c1_i32 : i32 to index
    %c0_14 = arith.constant 0 : index
    %c0_15 = arith.constant 0 : index
    %39 = vector.load %arg2[%38, %c0_14, %c0_15] : memref<8x8x384xf32, #tpu.memory_space<vmem>>, vector<1x8x384xf32>
    %40 = vector.shape_cast %39 : vector<1x8x384xf32> to vector<8x384xf32>
    %cst_16 = arith.constant dense<0.000000e+00> : vector<8x256xf32>
    %41 = tpu.matmul %33, %3, %cst_16 {dimension_numbers = #tpu.dot_dimension_numbers<[1], [0], [0], [1], [0, 0, 1, 1], [], []>} : vector<8x128xf32>, vector<128x256xf32>, vector<8x256xf32> -> vector<8x256xf32>
    %42 = vector.extract_strided_slice %40 {offsets = [0, 0], sizes = [8, 128], strides = [1, 1]} : vector<8x384xf32> to vector<8x128xf32>
    %43 = vector.extract_strided_slice %41 {offsets = [0, 0], sizes = [8, 128], strides = [1, 1]} : vector<8x256xf32> to vector<8x128xf32>
    %44 = arith.addf %42, %43 : vector<8x128xf32>
    %45 = math.tanh %44 : vector<8x128xf32>
    %cst_17 = arith.constant 1.000000e+00 : f32
    %46 = vector.broadcast %cst_17 : f32 to vector<8x128xf32>
    %47 = arith.addf %46, %45 : vector<8x128xf32>
    %48 = vector.extract_strided_slice %40 {offsets = [0, 128], sizes = [8, 128], strides = [1, 1]} : vector<8x384xf32> to vector<8x128xf32>
    %49 = vector.extract_strided_slice %41 {offsets = [0, 128], sizes = [8, 128], strides = [1, 1]} : vector<8x256xf32> to vector<8x128xf32>
    %50 = arith.addf %48, %49 : vector<8x128xf32>
    %cst_18 = arith.constant 5.000000e-01 : f32
    %51 = vector.broadcast %cst_18 : f32 to vector<8x128xf32>
    %52 = arith.mulf %51, %50 : vector<8x128xf32>
    %53 = math.tanh %52 : vector<8x128xf32>
    %cst_19 = arith.constant 1.000000e+00 : f32
    %54 = vector.broadcast %cst_19 : f32 to vector<8x128xf32>
    %55 = arith.addf %53, %54 : vector<8x128xf32>
    %cst_20 = arith.constant 5.000000e-01 : f32
    %56 = vector.broadcast %cst_20 : f32 to vector<8x128xf32>
    %57 = arith.mulf %56, %55 : vector<8x128xf32>
    %58 = arith.mulf %57, %33 : vector<8x128xf32>
    %cst_21 = arith.constant 1.000000e+00 : f32
    %59 = vector.broadcast %cst_21 : f32 to vector<8x128xf32>
    %60 = arith.subf %59, %57 : vector<8x128xf32>
    %61 = vector.extract_strided_slice %40 {offsets = [0, 256], sizes = [8, 128], strides = [1, 1]} : vector<8x384xf32> to vector<8x128xf32>
    %62 = arith.mulf %47, %33 : vector<8x128xf32>
    %63 = arith.addf %61, %62 : vector<8x128xf32>
    %64 = math.tanh %63 : vector<8x128xf32>
    %65 = arith.mulf %60, %64 : vector<8x128xf32>
    %66 = arith.addf %58, %65 : vector<8x128xf32>
    %67 = arith.index_cast %c1_i32 : i32 to index
    %c0_22 = arith.constant 0 : index
    %c0_23 = arith.constant 0 : index
    %68 = vector.load %arg5[%67, %c0_22, %c0_23] : memref<8x8x128xf32, #tpu.memory_space<vmem>>, vector<1x8x128xf32>
    %69 = vector.shape_cast %68 : vector<1x8x128xf32> to vector<8x128xf32>
    %70 = vector.shape_cast %66 : vector<8x128xf32> to vector<1x8x128xf32>
    tpu.vector_store %arg5[%67, %c0_22, %c0_23], %70 {strides = array<i32>} : memref<8x8x128xf32, #tpu.memory_space<vmem>>, vector<1x8x128xf32>,
    %c2_i32 = arith.constant 2 : i32
    %71 = arith.index_cast %c2_i32 : i32 to index
    %c0_24 = arith.constant 0 : index
    %c0_25 = arith.constant 0 : index
    %72 = vector.load %arg2[%71, %c0_24, %c0_25] : memref<8x8x384xf32, #tpu.memory_space<vmem>>, vector<1x8x384xf32>
    %73 = vector.shape_cast %72 : vector<1x8x384xf32> to vector<8x384xf32>
    %cst_26 = arith.constant dense<0.000000e+00> : vector<8x256xf32>
    %74 = tpu.matmul %66, %3, %cst_26 {dimension_numbers = #tpu.dot_dimension_numbers<[1], [0], [0], [1], [0, 0, 1, 1], [], []>} : vector<8x128xf32>, vector<128x256xf32>, vector<8x256xf32> -> vector<8x256xf32>
    %75 = vector.extract_strided_slice %73 {offsets = [0, 0], sizes = [8, 128], strides = [1, 1]} : vector<8x384xf32> to vector<8x128xf32>
    %76 = vector.extract_strided_slice %74 {offsets = [0, 0], sizes = [8, 128], strides = [1, 1]} : vector<8x256xf32> to vector<8x128xf32>
    %77 = arith.addf %75, %76 : vector<8x128xf32>
    %78 = math.tanh %77 : vector<8x128xf32>
    %cst_27 = arith.constant 1.000000e+00 : f32
    %79 = vector.broadcast %cst_27 : f32 to vector<8x128xf32>
    %80 = arith.addf %79, %78 : vector<8x128xf32>
    %81 = vector.extract_strided_slice %73 {offsets = [0, 128], sizes = [8, 128], strides = [1, 1]} : vector<8x384xf32> to vector<8x128xf32>
    %82 = vector.extract_strided_slice %74 {offsets = [0, 128], sizes = [8, 128], strides = [1, 1]} : vector<8x256xf32> to vector<8x128xf32>
    %83 = arith.addf %81, %82 : vector<8x128xf32>
    %cst_28 = arith.constant 5.000000e-01 : f32
    %84 = vector.broadcast %cst_28 : f32 to vector<8x128xf32>
    %85 = arith.mulf %84, %83 : vector<8x128xf32>
    %86 = math.tanh %85 : vector<8x128xf32>
    %cst_29 = arith.constant 1.000000e+00 : f32
    %87 = vector.broadcast %cst_29 : f32 to vector<8x128xf32>
    %88 = arith.addf %86, %87 : vector<8x128xf32>
    %cst_30 = arith.constant 5.000000e-01 : f32
    %89 = vector.broadcast %cst_30 : f32 to vector<8x128xf32>
    %90 = arith.mulf %89, %88 : vector<8x128xf32>
    %91 = arith.mulf %90, %66 : vector<8x128xf32>
    %cst_31 = arith.constant 1.000000e+00 : f32
    %92 = vector.broadcast %cst_31 : f32 to vector<8x128xf32>
    %93 = arith.subf %92, %90 : vector<8x128xf32>
    %94 = vector.extract_strided_slice %73 {offsets = [0, 256], sizes = [8, 128], strides = [1, 1]} : vector<8x384xf32> to vector<8x128xf32>
    %95 = arith.mulf %80, %66 : vector<8x128xf32>
    %96 = arith.addf %94, %95 : vector<8x128xf32>
    %97 = math.tanh %96 : vector<8x128xf32>
    %98 = arith.mulf %93, %97 : vector<8x128xf32>
    %99 = arith.addf %91, %98 : vector<8x128xf32>
    %100 = arith.index_cast %c2_i32 : i32 to index
    %c0_32 = arith.constant 0 : index
    %c0_33 = arith.constant 0 : index
    %101 = vector.load %arg5[%100, %c0_32, %c0_33] : memref<8x8x128xf32, #tpu.memory_space<vmem>>, vector<1x8x128xf32>
    %102 = vector.shape_cast %101 : vector<1x8x128xf32> to vector<8x128xf32>
    %103 = vector.shape_cast %99 : vector<8x128xf32> to vector<1x8x128xf32>
    tpu.vector_store %arg5[%100, %c0_32, %c0_33], %103 {strides = array<i32>} : memref<8x8x128xf32, #tpu.memory_space<vmem>>, vector<1x8x128xf32>,
    %c3_i32 = arith.constant 3 : i32
    %104 = arith.index_cast %c3_i32 : i32 to index
    %c0_34 = arith.constant 0 : index
    %c0_35 = arith.constant 0 : index
    %105 = vector.load %arg2[%104, %c0_34, %c0_35] : memref<8x8x384xf32, #tpu.memory_space<vmem>>, vector<1x8x384xf32>
    %106 = vector.shape_cast %105 : vector<1x8x384xf32> to vector<8x384xf32>
    %cst_36 = arith.constant dense<0.000000e+00> : vector<8x256xf32>
    %107 = tpu.matmul %99, %3, %cst_36 {dimension_numbers = #tpu.dot_dimension_numbers<[1], [0], [0], [1], [0, 0, 1, 1], [], []>} : vector<8x128xf32>, vector<128x256xf32>, vector<8x256xf32> -> vector<8x256xf32>
    %108 = vector.extract_strided_slice %106 {offsets = [0, 0], sizes = [8, 128], strides = [1, 1]} : vector<8x384xf32> to vector<8x128xf32>
    %109 = vector.extract_strided_slice %107 {offsets = [0, 0], sizes = [8, 128], strides = [1, 1]} : vector<8x256xf32> to vector<8x128xf32>
    %110 = arith.addf %108, %109 : vector<8x128xf32>
    %111 = math.tanh %110 : vector<8x128xf32>
    %cst_37 = arith.constant 1.000000e+00 : f32
    %112 = vector.broadcast %cst_37 : f32 to vector<8x128xf32>
    %113 = arith.addf %112, %111 : vector<8x128xf32>
    %114 = vector.extract_strided_slice %106 {offsets = [0, 128], sizes = [8, 128], strides = [1, 1]} : vector<8x384xf32> to vector<8x128xf32>
    %115 = vector.extract_strided_slice %107 {offsets = [0, 128], sizes = [8, 128], strides = [1, 1]} : vector<8x256xf32> to vector<8x128xf32>
    %116 = arith.addf %114, %115 : vector<8x128xf32>
    %cst_38 = arith.constant 5.000000e-01 : f32
    %117 = vector.broadcast %cst_38 : f32 to vector<8x128xf32>
    %118 = arith.mulf %117, %116 : vector<8x128xf32>
    %119 = math.tanh %118 : vector<8x128xf32>
    %cst_39 = arith.constant 1.000000e+00 : f32
    %120 = vector.broadcast %cst_39 : f32 to vector<8x128xf32>
    %121 = arith.addf %119, %120 : vector<8x128xf32>
    %cst_40 = arith.constant 5.000000e-01 : f32
    %122 = vector.broadcast %cst_40 : f32 to vector<8x128xf32>
    %123 = arith.mulf %122, %121 : vector<8x128xf32>
    %124 = arith.mulf %123, %99 : vector<8x128xf32>
    %cst_41 = arith.constant 1.000000e+00 : f32
    %125 = vector.broadcast %cst_41 : f32 to vector<8x128xf32>
    %126 = arith.subf %125, %123 : vector<8x128xf32>
    %127 = vector.extract_strided_slice %106 {offsets = [0, 256], sizes = [8, 128], strides = [1, 1]} : vector<8x384xf32> to vector<8x128xf32>
    %128 = arith.mulf %113, %99 : vector<8x128xf32>
    %129 = arith.addf %127, %128 : vector<8x128xf32>
    %130 = math.tanh %129 : vector<8x128xf32>
    %131 = arith.mulf %126, %130 : vector<8x128xf32>
    %132 = arith.addf %124, %131 : vector<8x128xf32>
    %133 = arith.index_cast %c3_i32 : i32 to index
    %c0_42 = arith.constant 0 : index
    %c0_43 = arith.constant 0 : index
    %134 = vector.load %arg5[%133, %c0_42, %c0_43] : memref<8x8x128xf32, #tpu.memory_space<vmem>>, vector<1x8x128xf32>
    %135 = vector.shape_cast %134 : vector<1x8x128xf32> to vector<8x128xf32>
    %136 = vector.shape_cast %132 : vector<8x128xf32> to vector<1x8x128xf32>
    tpu.vector_store %arg5[%133, %c0_42, %c0_43], %136 {strides = array<i32>} : memref<8x8x128xf32, #tpu.memory_space<vmem>>, vector<1x8x128xf32>,
    %c4_i32 = arith.constant 4 : i32
    %137 = arith.index_cast %c4_i32 : i32 to index
    %c0_44 = arith.constant 0 : index
    %c0_45 = arith.constant 0 : index
    %138 = vector.load %arg2[%137, %c0_44, %c0_45] : memref<8x8x384xf32, #tpu.memory_space<vmem>>, vector<1x8x384xf32>
    %139 = vector.shape_cast %138 : vector<1x8x384xf32> to vector<8x384xf32>
    %cst_46 = arith.constant dense<0.000000e+00> : vector<8x256xf32>
    %140 = tpu.matmul %132, %3, %cst_46 {dimension_numbers = #tpu.dot_dimension_numbers<[1], [0], [0], [1], [0, 0, 1, 1], [], []>} : vector<8x128xf32>, vector<128x256xf32>, vector<8x256xf32> -> vector<8x256xf32>
    %141 = vector.extract_strided_slice %139 {offsets = [0, 0], sizes = [8, 128], strides = [1, 1]} : vector<8x384xf32> to vector<8x128xf32>
    %142 = vector.extract_strided_slice %140 {offsets = [0, 0], sizes = [8, 128], strides = [1, 1]} : vector<8x256xf32> to vector<8x128xf32>
    %143 = arith.addf %141, %142 : vector<8x128xf32>
    %144 = math.tanh %143 : vector<8x128xf32>
    %cst_47 = arith.constant 1.000000e+00 : f32
    %145 = vector.broadcast %cst_47 : f32 to vector<8x128xf32>
    %146 = arith.addf %145, %144 : vector<8x128xf32>
    %147 = vector.extract_strided_slice %139 {offsets = [0, 128], sizes = [8, 128], strides = [1, 1]} : vector<8x384xf32> to vector<8x128xf32>
    %148 = vector.extract_strided_slice %140 {offsets = [0, 128], sizes = [8, 128], strides = [1, 1]} : vector<8x256xf32> to vector<8x128xf32>
    %149 = arith.addf %147, %148 : vector<8x128xf32>
    %cst_48 = arith.constant 5.000000e-01 : f32
    %150 = vector.broadcast %cst_48 : f32 to vector<8x128xf32>
    %151 = arith.mulf %150, %149 : vector<8x128xf32>
    %152 = math.tanh %151 : vector<8x128xf32>
    %cst_49 = arith.constant 1.000000e+00 : f32
    %153 = vector.broadcast %cst_49 : f32 to vector<8x128xf32>
    %154 = arith.addf %152, %153 : vector<8x128xf32>
    %cst_50 = arith.constant 5.000000e-01 : f32
    %155 = vector.broadcast %cst_50 : f32 to vector<8x128xf32>
    %156 = arith.mulf %155, %154 : vector<8x128xf32>
    %157 = arith.mulf %156, %132 : vector<8x128xf32>
    %cst_51 = arith.constant 1.000000e+00 : f32
    %158 = vector.broadcast %cst_51 : f32 to vector<8x128xf32>
    %159 = arith.subf %158, %156 : vector<8x128xf32>
    %160 = vector.extract_strided_slice %139 {offsets = [0, 256], sizes = [8, 128], strides = [1, 1]} : vector<8x384xf32> to vector<8x128xf32>
    %161 = arith.mulf %146, %132 : vector<8x128xf32>
    %162 = arith.addf %160, %161 : vector<8x128xf32>
    %163 = math.tanh %162 : vector<8x128xf32>
    %164 = arith.mulf %159, %163 : vector<8x128xf32>
    %165 = arith.addf %157, %164 : vector<8x128xf32>
    %166 = arith.index_cast %c4_i32 : i32 to index
    %c0_52 = arith.constant 0 : index
    %c0_53 = arith.constant 0 : index
    %167 = vector.load %arg5[%166, %c0_52, %c0_53] : memref<8x8x128xf32, #tpu.memory_space<vmem>>, vector<1x8x128xf32>
    %168 = vector.shape_cast %167 : vector<1x8x128xf32> to vector<8x128xf32>
    %169 = vector.shape_cast %165 : vector<8x128xf32> to vector<1x8x128xf32>
    tpu.vector_store %arg5[%166, %c0_52, %c0_53], %169 {strides = array<i32>} : memref<8x8x128xf32, #tpu.memory_space<vmem>>, vector<1x8x128xf32>,
    %c5_i32 = arith.constant 5 : i32
    %170 = arith.index_cast %c5_i32 : i32 to index
    %c0_54 = arith.constant 0 : index
    %c0_55 = arith.constant 0 : index
    %171 = vector.load %arg2[%170, %c0_54, %c0_55] : memref<8x8x384xf32, #tpu.memory_space<vmem>>, vector<1x8x384xf32>
    %172 = vector.shape_cast %171 : vector<1x8x384xf32> to vector<8x384xf32>
    %cst_56 = arith.constant dense<0.000000e+00> : vector<8x256xf32>
    %173 = tpu.matmul %165, %3, %cst_56 {dimension_numbers = #tpu.dot_dimension_numbers<[1], [0], [0], [1], [0, 0, 1, 1], [], []>} : vector<8x128xf32>, vector<128x256xf32>, vector<8x256xf32> -> vector<8x256xf32>
    %174 = vector.extract_strided_slice %172 {offsets = [0, 0], sizes = [8, 128], strides = [1, 1]} : vector<8x384xf32> to vector<8x128xf32>
    %175 = vector.extract_strided_slice %173 {offsets = [0, 0], sizes = [8, 128], strides = [1, 1]} : vector<8x256xf32> to vector<8x128xf32>
    %176 = arith.addf %174, %175 : vector<8x128xf32>
    %177 = math.tanh %176 : vector<8x128xf32>
    %cst_57 = arith.constant 1.000000e+00 : f32
    %178 = vector.broadcast %cst_57 : f32 to vector<8x128xf32>
    %179 = arith.addf %178, %177 : vector<8x128xf32>
    %180 = vector.extract_strided_slice %172 {offsets = [0, 128], sizes = [8, 128], strides = [1, 1]} : vector<8x384xf32> to vector<8x128xf32>
    %181 = vector.extract_strided_slice %173 {offsets = [0, 128], sizes = [8, 128], strides = [1, 1]} : vector<8x256xf32> to vector<8x128xf32>
    %182 = arith.addf %180, %181 : vector<8x128xf32>
    %cst_58 = arith.constant 5.000000e-01 : f32
    %183 = vector.broadcast %cst_58 : f32 to vector<8x128xf32>
    %184 = arith.mulf %183, %182 : vector<8x128xf32>
    %185 = math.tanh %184 : vector<8x128xf32>
    %cst_59 = arith.constant 1.000000e+00 : f32
    %186 = vector.broadcast %cst_59 : f32 to vector<8x128xf32>
    %187 = arith.addf %185, %186 : vector<8x128xf32>
    %cst_60 = arith.constant 5.000000e-01 : f32
    %188 = vector.broadcast %cst_60 : f32 to vector<8x128xf32>
    %189 = arith.mulf %188, %187 : vector<8x128xf32>
    %190 = arith.mulf %189, %165 : vector<8x128xf32>
    %cst_61 = arith.constant 1.000000e+00 : f32
    %191 = vector.broadcast %cst_61 : f32 to vector<8x128xf32>
    %192 = arith.subf %191, %189 : vector<8x128xf32>
    %193 = vector.extract_strided_slice %172 {offsets = [0, 256], sizes = [8, 128], strides = [1, 1]} : vector<8x384xf32> to vector<8x128xf32>
    %194 = arith.mulf %179, %165 : vector<8x128xf32>
    %195 = arith.addf %193, %194 : vector<8x128xf32>
    %196 = math.tanh %195 : vector<8x128xf32>
    %197 = arith.mulf %192, %196 : vector<8x128xf32>
    %198 = arith.addf %190, %197 : vector<8x128xf32>
    %199 = arith.index_cast %c5_i32 : i32 to index
    %c0_62 = arith.constant 0 : index
    %c0_63 = arith.constant 0 : index
    %200 = vector.load %arg5[%199, %c0_62, %c0_63] : memref<8x8x128xf32, #tpu.memory_space<vmem>>, vector<1x8x128xf32>
    %201 = vector.shape_cast %200 : vector<1x8x128xf32> to vector<8x128xf32>
    %202 = vector.shape_cast %198 : vector<8x128xf32> to vector<1x8x128xf32>
    tpu.vector_store %arg5[%199, %c0_62, %c0_63], %202 {strides = array<i32>} : memref<8x8x128xf32, #tpu.memory_space<vmem>>, vector<1x8x128xf32>,
    %c6_i32 = arith.constant 6 : i32
    %203 = arith.index_cast %c6_i32 : i32 to index
    %c0_64 = arith.constant 0 : index
    %c0_65 = arith.constant 0 : index
    %204 = vector.load %arg2[%203, %c0_64, %c0_65] : memref<8x8x384xf32, #tpu.memory_space<vmem>>, vector<1x8x384xf32>
    %205 = vector.shape_cast %204 : vector<1x8x384xf32> to vector<8x384xf32>
    %cst_66 = arith.constant dense<0.000000e+00> : vector<8x256xf32>
    %206 = tpu.matmul %198, %3, %cst_66 {dimension_numbers = #tpu.dot_dimension_numbers<[1], [0], [0], [1], [0, 0, 1, 1], [], []>} : vector<8x128xf32>, vector<128x256xf32>, vector<8x256xf32> -> vector<8x256xf32>
    %207 = vector.extract_strided_slice %205 {offsets = [0, 0], sizes = [8, 128], strides = [1, 1]} : vector<8x384xf32> to vector<8x128xf32>
    %208 = vector.extract_strided_slice %206 {offsets = [0, 0], sizes = [8, 128], strides = [1, 1]} : vector<8x256xf32> to vector<8x128xf32>
    %209 = arith.addf %207, %208 : vector<8x128xf32>
    %210 = math.tanh %209 : vector<8x128xf32>
    %cst_67 = arith.constant 1.000000e+00 : f32
    %211 = vector.broadcast %cst_67 : f32 to vector<8x128xf32>
    %212 = arith.addf %211, %210 : vector<8x128xf32>
    %213 = vector.extract_strided_slice %205 {offsets = [0, 128], sizes = [8, 128], strides = [1, 1]} : vector<8x384xf32> to vector<8x128xf32>
    %214 = vector.extract_strided_slice %206 {offsets = [0, 128], sizes = [8, 128], strides = [1, 1]} : vector<8x256xf32> to vector<8x128xf32>
    %215 = arith.addf %213, %214 : vector<8x128xf32>
    %cst_68 = arith.constant 5.000000e-01 : f32
    %216 = vector.broadcast %cst_68 : f32 to vector<8x128xf32>
    %217 = arith.mulf %216, %215 : vector<8x128xf32>
    %218 = math.tanh %217 : vector<8x128xf32>
    %cst_69 = arith.constant 1.000000e+00 : f32
    %219 = vector.broadcast %cst_69 : f32 to vector<8x128xf32>
    %220 = arith.addf %218, %219 : vector<8x128xf32>
    %cst_70 = arith.constant 5.000000e-01 : f32
    %221 = vector.broadcast %cst_70 : f32 to vector<8x128xf32>
    %222 = arith.mulf %221, %220 : vector<8x128xf32>
    %223 = arith.mulf %222, %198 : vector<8x128xf32>
    %cst_71 = arith.constant 1.000000e+00 : f32
    %224 = vector.broadcast %cst_71 : f32 to vector<8x128xf32>
    %225 = arith.subf %224, %222 : vector<8x128xf32>
    %226 = vector.extract_strided_slice %205 {offsets = [0, 256], sizes = [8, 128], strides = [1, 1]} : vector<8x384xf32> to vector<8x128xf32>
    %227 = arith.mulf %212, %198 : vector<8x128xf32>
    %228 = arith.addf %226, %227 : vector<8x128xf32>
    %229 = math.tanh %228 : vector<8x128xf32>
    %230 = arith.mulf %225, %229 : vector<8x128xf32>
    %231 = arith.addf %223, %230 : vector<8x128xf32>
    %232 = arith.index_cast %c6_i32 : i32 to index
    %c0_72 = arith.constant 0 : index
    %c0_73 = arith.constant 0 : index
    %233 = vector.load %arg5[%232, %c0_72, %c0_73] : memref<8x8x128xf32, #tpu.memory_space<vmem>>, vector<1x8x128xf32>
    %234 = vector.shape_cast %233 : vector<1x8x128xf32> to vector<8x128xf32>
    %235 = vector.shape_cast %231 : vector<8x128xf32> to vector<1x8x128xf32>
    tpu.vector_store %arg5[%232, %c0_72, %c0_73], %235 {strides = array<i32>} : memref<8x8x128xf32, #tpu.memory_space<vmem>>, vector<1x8x128xf32>,
    %c7_i32 = arith.constant 7 : i32
    %236 = arith.index_cast %c7_i32 : i32 to index
    %c0_74 = arith.constant 0 : index
    %c0_75 = arith.constant 0 : index
    %237 = vector.load %arg2[%236, %c0_74, %c0_75] : memref<8x8x384xf32, #tpu.memory_space<vmem>>, vector<1x8x384xf32>
    %238 = vector.shape_cast %237 : vector<1x8x384xf32> to vector<8x384xf32>
    %cst_76 = arith.constant dense<0.000000e+00> : vector<8x256xf32>
    %239 = tpu.matmul %231, %3, %cst_76 {dimension_numbers = #tpu.dot_dimension_numbers<[1], [0], [0], [1], [0, 0, 1, 1], [], []>} : vector<8x128xf32>, vector<128x256xf32>, vector<8x256xf32> -> vector<8x256xf32>
    %240 = vector.extract_strided_slice %238 {offsets = [0, 0], sizes = [8, 128], strides = [1, 1]} : vector<8x384xf32> to vector<8x128xf32>
    %241 = vector.extract_strided_slice %239 {offsets = [0, 0], sizes = [8, 128], strides = [1, 1]} : vector<8x256xf32> to vector<8x128xf32>
    %242 = arith.addf %240, %241 : vector<8x128xf32>
    %243 = math.tanh %242 : vector<8x128xf32>
    %cst_77 = arith.constant 1.000000e+00 : f32
    %244 = vector.broadcast %cst_77 : f32 to vector<8x128xf32>
    %245 = arith.addf %244, %243 : vector<8x128xf32>
    %246 = vector.extract_strided_slice %238 {offsets = [0, 128], sizes = [8, 128], strides = [1, 1]} : vector<8x384xf32> to vector<8x128xf32>
    %247 = vector.extract_strided_slice %239 {offsets = [0, 128], sizes = [8, 128], strides = [1, 1]} : vector<8x256xf32> to vector<8x128xf32>
    %248 = arith.addf %246, %247 : vector<8x128xf32>
    %cst_78 = arith.constant 5.000000e-01 : f32
    %249 = vector.broadcast %cst_78 : f32 to vector<8x128xf32>
    %250 = arith.mulf %249, %248 : vector<8x128xf32>
    %251 = math.tanh %250 : vector<8x128xf32>
    %cst_79 = arith.constant 1.000000e+00 : f32
    %252 = vector.broadcast %cst_79 : f32 to vector<8x128xf32>
    %253 = arith.addf %251, %252 : vector<8x128xf32>
    %cst_80 = arith.constant 5.000000e-01 : f32
    %254 = vector.broadcast %cst_80 : f32 to vector<8x128xf32>
    %255 = arith.mulf %254, %253 : vector<8x128xf32>
    %256 = arith.mulf %255, %231 : vector<8x128xf32>
    %cst_81 = arith.constant 1.000000e+00 : f32
    %257 = vector.broadcast %cst_81 : f32 to vector<8x128xf32>
    %258 = arith.subf %257, %255 : vector<8x128xf32>
    %259 = vector.extract_strided_slice %238 {offsets = [0, 256], sizes = [8, 128], strides = [1, 1]} : vector<8x384xf32> to vector<8x128xf32>
    %260 = arith.mulf %245, %231 : vector<8x128xf32>
    %261 = arith.addf %259, %260 : vector<8x128xf32>
    %262 = math.tanh %261 : vector<8x128xf32>
    %263 = arith.mulf %258, %262 : vector<8x128xf32>
    %264 = arith.addf %256, %263 : vector<8x128xf32>
    %265 = arith.index_cast %c7_i32 : i32 to index
    %c0_82 = arith.constant 0 : index
    %c0_83 = arith.constant 0 : index
    %266 = vector.load %arg5[%265, %c0_82, %c0_83] : memref<8x8x128xf32, #tpu.memory_space<vmem>>, vector<1x8x128xf32>
    %267 = vector.shape_cast %266 : vector<1x8x128xf32> to vector<8x128xf32>
    %268 = vector.shape_cast %264 : vector<8x128xf32> to vector<1x8x128xf32>
    tpu.vector_store %arg5[%265, %c0_82, %c0_83], %268 {strides = array<i32>} : memref<8x8x128xf32, #tpu.memory_space<vmem>>, vector<1x8x128xf32>,
    %c8_i32 = arith.constant 8 : i32
    %c0_84 = arith.constant 0 : index
    %c0_85 = arith.constant 0 : index
    %269 = vector.load %arg6[%c0_84, %c0_85] : memref<8x128xf32, #tpu.memory_space<vmem>>, vector<8x128xf32>
    tpu.vector_store %arg6[%c0_84, %c0_85], %264 {strides = array<i32>} : memref<8x128xf32, #tpu.memory_space<vmem>>, vector<8x128xf32>,
    return
  }
  func.func @transform_0(%arg0: i32, %arg1: i32) -> (i32, i32, i32) {
    %c0_i32 = arith.constant 0 : i32
    %c0_i32_0 = arith.constant 0 : i32
    return %arg1, %arg0, %c0_i32 : i32, i32, i32
  }
  func.func @transform_1(%arg0: i32, %arg1: i32) -> (i32, i32) {
    %c0_i32 = arith.constant 0 : i32
    %c0_i32_0 = arith.constant 0 : i32
    return %arg0, %c0_i32 : i32, i32
  }
  func.func @transform_2(%arg0: i32, %arg1: i32) -> (i32, i32) {
    %c0_i32 = arith.constant 0 : i32
    %c0_i32_0 = arith.constant 0 : i32
    %c0_i32_1 = arith.constant 0 : i32
    return %c0_i32, %c0_i32_0 : i32, i32
  }
  func.func @transform_3(%arg0: i32, %arg1: i32) -> (i32, i32, i32) {
    %c0_i32 = arith.constant 0 : i32
    %c0_i32_0 = arith.constant 0 : i32
    return %arg1, %arg0, %c0_i32 : i32, i32, i32
  }
}

</mosaic_0001>

<llo_original>
// kernel: nbrc_forward.1
$region0: #{nbrc_forward.1}
  #allocation0 [shape = 'u32[]', space=smem, size = 0x4, offset = 0x4, fixed_abs, tag = 'smem constant byte address 0x4 - core index']
  #allocation1 [shape = 'u32[144,128]{1,0:T(1,128)}', space=vmem, size = 0x12000, scoped, tag = 'internal scratch']
  #allocation2 [shape = 'f32[8,128]{1,0:T(8,128)}', space=vmem, size = 0x1000, scoped, tag = 'scratch operand']
  %s0 = inlined_call_operand.vmem [shape: f32[8,8,384], index: 0, kind: input, shape index: {}]
  %s1 = inlined_call_operand.vmem [shape: f32[8,128], index: 1, kind: input, shape index: {}]
  %s2 = inlined_call_operand.vmem [shape: f32[128,256], index: 2, kind: input, shape index: {}]
  %s3 = inlined_call_operand.vmem [shape: f32[8,8,128], index: 3, kind: output, shape index: {}]
  %s4 = sld [smem:[#allocation0]]
  $region26: #{nbrc_forward.1} parent=0
    _
  %s6 = ssub.s32 1, %s4
  %s7 = scalar_select 0, %s6, %s4
  // Predicated region
  $region2: #{nbrc_forward.1} parent=0 // pred_check
    _
  $region3: #{nbrc_forward.1} parent=0 // pred_check_branch
    %9 = sbr.rel (0) target = $region5
  $region4: #{nbrc_forward.1} parent=0 // pred_region
    _
  $region5: #{nbrc_forward.1} parent=0 // pred_fallthru
    _
  // Predicated region
  $region6: #{nbrc_forward.1} parent=0 // pred_check
    _
  $region7: #{nbrc_forward.1} parent=0 // pred_check_branch
    %11 = sbr.rel (0) target = $region9
  $region8: #{nbrc_forward.1} parent=0 // pred_region
    _
  $region9: #{nbrc_forward.1} parent=0 // pred_fallthru
    _
  // Predicated region
  $region10: #{nbrc_forward.1} parent=0 // pred_check
    _
  $region11: #{nbrc_forward.1} parent=0 // pred_check_branch
    %13 = sbr.rel (0) target = $region13
  $region12: #{nbrc_forward.1} parent=0 // pred_region
    _
  $region13: #{nbrc_forward.1} parent=0 // pred_fallthru
    _
  %p14 = scmp.eq.s32.totalorder 0, 0
  // Predicated region
  $region14: #{nbrc_forward.1} parent=0 // pred_check
    %p15 = pneg %p14
  $region15: #{nbrc_forward.1} parent=0 // pred_check_branch
    %17 = sbr.rel (%p15) target = $region17
  $region16: #{nbrc_forward.1} parent=0 // pred_region
    %v18 = vld [vmem:[%s1] sm:$0xff]
    %19 = vst [vmem:[#allocation2] sm:$0xff] %v18
  $region17: #{nbrc_forward.1} parent=0 // pred_fallthru
    _
  %v20 = vld [vmem:[%s2] sm:$0xff]
  %v21 = vld [vmem:[%s2 + $0x8] sm:$0xff]
  %v22 = vld [vmem:[%s2 + $0x10] sm:$0xff]
  %v23 = vld [vmem:[%s2 + $0x18] sm:$0xff]
  %v24 = vld [vmem:[%s2 + $0x20] sm:$0xff]
  %v25 = vld [vmem:[%s2 + $0x28] sm:$0xff]
  %v26 = vld [vmem:[%s2 + $0x30] sm:$0xff]
  %v27 = vld [vmem:[%s2 + $0x38] sm:$0xff]
  %v28 = vld [vmem:[%s2 + $0x40] sm:$0xff]
  %v29 = vld [vmem:[%s2 + $0x48] sm:$0xff]
  %v30 = vld [vmem:[%s2 + $0x50] sm:$0xff]
  %v31 = vld [vmem:[%s2 + $0x58] sm:$0xff]
  %v32 = vld [vmem:[%s2 + $0x60] sm:$0xff]
  %v33 = vld [vmem:[%s2 + $0x68] sm:$0xff]
  %v34 = vld [vmem:[%s2 + $0x70] sm:$0xff]
  %v35 = vld [vmem:[%s2 + $0x78] sm:$0xff]
  %v36 = vld [vmem:[%s2 + $0x80] sm:$0xff]
  %v37 = vld [vmem:[%s2 + $0x88] sm:$0xff]
  %v38 = vld [vmem:[%s2 + $0x90] sm:$0xff]
  %v39 = vld [vmem:[%s2 + $0x98] sm:$0xff]
  %v40 = vld [vmem:[%s2 + $0xa0] sm:$0xff]
  %v41 = vld [vmem:[%s2 + $0xa8] sm:$0xff]
  %v42 = vld [vmem:[%s2 + $0xb0] sm:$0xff]
  %v43 = vld [vmem:[%s2 + $0xb8] sm:$0xff]
  %v44 = vld [vmem:[%s2 + $0xc0] sm:$0xff]
  %v45 = vld [vmem:[%s2 + $0xc8] sm:$0xff]
  %v46 = vld [vmem:[%s2 + $0xd0] sm:$0xff]
  %v47 = vld [vmem:[%s2 + $0xd8] sm:$0xff]
  %v48 = vld [vmem:[%s2 + $0xe0] sm:$0xff]
  %v49 = vld [vmem:[%s2 + $0xe8] sm:$0xff]
  %v50 = vld [vmem:[%s2 + $0xf0] sm:$0xff]
  %v51 = vld [vmem:[%s2 + $0xf8] sm:$0xff]
  %v52 = vld [vmem:[#allocation2] sm:$0xff]
  %v53 = vld [vmem:[%s0] sm:$0xff]
  %v54 = vld [vmem:[%s0 + $0x8] sm:$0xff]
  %v55 = vld [vmem:[%s0 + $0x10] sm:$0xff]
  %56 = vmatprep.subr.mxu0 %v51
  %57 = vmatpush1.msra.mxu0 %v50
  %58 = vmatprep.subr.mxu0 %v49
  %59 = vmatpush1.msra.mxu0 %v48
  %60 = vmatprep.subr.mxu0 %v47
  %61 = vmatpush1.msra.mxu0 %v46
  %62 = vmatprep.subr.mxu0 %v45
  %63 = vmatpush1.msra.mxu0 %v44
  %64 = vmatprep.subr.mxu0 %v43
  %65 = vmatpush1.msra.mxu0 %v42
  %66 = vmatprep.subr.mxu0 %v41
  %67 = vmatpush1.msra.mxu0 %v40
  %68 = vmatprep.subr.mxu0 %v39
  %69 = vmatpush1.msra.mxu0 %v38
  %70 = vmatprep.subr.mxu0 %v37
  %71 = vmatpush1.msra.mxu0 %v36
  %72 = vmatprep.subr.mxu0 %v35
  %73 = vmatpush1.msra.mxu0 %v34
  %74 = vmatprep.subr.mxu0 %v33
  %75 = vmatpush1.msra.mxu0 %v32
  %76 = vmatprep.subr.mxu0 %v31
  %77 = vmatpush1.msra.mxu0 %v30
  %78 = vmatprep.subr.mxu0 %v29
  %79 = vmatpush1.msra.mxu0 %v28
  %80 = vmatprep.subr.mxu0 %v27
  %81 = vmatpush1.msra.mxu0 %v26
  %82 = vmatprep.subr.mxu0 %v25
  %83 = vmatpush1.msra.mxu0 %v24
  %84 = vmatprep.subr.mxu0 %v23
  %85 = vmatpush1.msra.mxu0 %v22
  %86 = vmatprep.subr.mxu0 %v21
  %87 = vmatpush1.msra.mxu0 %v20
  %88 = vmatprep.subr.mxu0 0.0
  %89 = vmatpush2.msra.mxu0 0.0
  %90 = vmatprep.subr.mxu0 0.0
  %91 = vmatpush2.msra.mxu0 0.0
  %92 = vmatprep.subr.mxu0 0.0
  %93 = vmatpush2.msra.mxu0 0.0
  %94 = vmatprep.subr.mxu0 0.0
  %95 = vmatpush2.msra.mxu0 0.0
  %96 = vmatprep.subr.mxu0 0.0
  %97 = vmatpush2.msra.mxu0 0.0
  %98 = vmatprep.subr.mxu0 0.0
  %99 = vmatpush2.msra.mxu0 0.0
  %100 = vmatprep.subr.mxu0 0.0
  %101 = vmatpush2.msra.mxu0 0.0
  %102 = vmatprep.subr.mxu0 0.0
  %103 = vmatpush2.msra.mxu0 0.0
  %104 = vmatprep.subr.mxu0 0.0
  %105 = vmatpush2.msra.mxu0 0.0
  %106 = vmatprep.subr.mxu0 0.0
  %107 = vmatpush2.msra.mxu0 0.0
  %108 = vmatprep.subr.mxu0 0.0
  %109 = vmatpush2.msra.mxu0 0.0
  %110 = vmatprep.subr.mxu0 0.0
  %111 = vmatpush2.msra.mxu0 0.0
  %112 = vmatprep.subr.mxu0 0.0
  %113 = vmatpush2.msra.mxu0 0.0
  %114 = vmatprep.subr.mxu0 0.0
  %115 = vmatpush2.msra.mxu0 0.0
  %116 = vmatprep.subr.mxu0 0.0
  %117 = vmatpush2.msra.mxu0 0.0
  %118 = vmatprep.subr.mxu0 0.0
  %119 = vmatpush2.msra.mxu0 0.0
  %120 = vmatprep.mubr.f32.mxu0 0.0
  %121 = vmatmul.mubr.f32.gmra.mxu0 %v52
  %v122 = vpop.f32.mrf.mxu0
  %v123 = vadd.f32 0.0, %v122
  %v124 = vpop.f32.mrf.mxu0
  %v125 = vadd.f32 0.0, %v124
  %126 = vdwg.mxu0
  %v127 = vadd.f32 %v53, %v123
  %v128 = vtanh.pop %v127
  %v129 = vadd.f32 %v128, 1.0
  %v130 = vadd.f32 %v54, %v125
  %v131 = vmul.f32 %v130, 0.5
  %v132 = vtanh.pop %v131
  %v133 = vadd.f32 %v132, 1.0
  %v134 = vmul.f32 %v133, 0.5
  %v135 = vmul.f32 %v134, %v52
  %v136 = vsub.f32 1.0, %v134
  %v137 = vmul.f32 %v129, %v52
  %v138 = vadd.f32 %v55, %v137
  %v139 = vtanh.pop %v138
  %v140 = vmul.f32 %v136, %v139
  %v141 = vadd.f32 %v135, %v140
  %142 = vst [vmem:[%s3] sm:$0xff] %v141
  %s143 = scalar_lea.vmem %s0, 24
  %v144 = vld [vmem:[%s143] sm:$0xff]
  %v145 = vld [vmem:[%s143 + $0x8] sm:$0xff]
  %v146 = vld [vmem:[%s143 + $0x10] sm:$0xff]
  %147 = vmatprep.subr.mxu0 %v51
  %148 = vmatpush1.msra.mxu0 %v50
  %149 = vmatprep.subr.mxu0 %v49
  %150 = vmatpush1.msra.mxu0 %v48
  %151 = vmatprep.subr.mxu0 %v47
  %152 = vmatpush1.msra.mxu0 %v46
  %153 = vmatprep.subr.mxu0 %v45
  %154 = vmatpush1.msra.mxu0 %v44
  %155 = vmatprep.subr.mxu0 %v43
  %156 = vmatpush1.msra.mxu0 %v42
  %157 = vmatprep.subr.mxu0 %v41
  %158 = vmatpush1.msra.mxu0 %v40
  %159 = vmatprep.subr.mxu0 %v39
  %160 = vmatpush1.msra.mxu0 %v38
  %161 = vmatprep.subr.mxu0 %v37
  %162 = vmatpush1.msra.mxu0 %v36
  %163 = vmatprep.subr.mxu0 %v35
  %164 = vmatpush1.msra.mxu0 %v34
  %165 = vmatprep.subr.mxu0 %v33
  %166 = vmatpush1.msra.mxu0 %v32
  %167 = vmatprep.subr.mxu0 %v31
  %168 = vmatpush1.msra.mxu0 %v30
  %169 = vmatprep.subr.mxu0 %v29
  %170 = vmatpush1.msra.mxu0 %v28
  %171 = vmatprep.subr.mxu0 %v27
  %172 = vmatpush1.msra.mxu0 %v26
  %173 = vmatprep.subr.mxu0 %v25
  %174 = vmatpush1.msra.mxu0 %v24
  %175 = vmatprep.subr.mxu0 %v23
  %176 = vmatpush1.msra.mxu0 %v22
  %177 = vmatprep.subr.mxu0 %v21
  %178 = vmatpush1.msra.mxu0 %v20
  %179 = vmatprep.subr.mxu0 0.0
  %180 = vmatpush2.msra.mxu0 0.0
  %181 = vmatprep.subr.mxu0 0.0
  %182 = vmatpush2.msra.mxu0 0.0
  %183 = vmatprep.subr.mxu0 0.0
  %184 = vmatpush2.msra.mxu0 0.0
  %185 = vmatprep.subr.mxu0 0.0
  %186 = vmatpush2.msra.mxu0 0.0
  %187 = vmatprep.subr.mxu0 0.0
  %188 = vmatpush2.msra.mxu0 0.0
  %189 = vmatprep.subr.mxu0 0.0
  %190 = vmatpush2.msra.mxu0 0.0
  %191 = vmatprep.subr.mxu0 0.0
  %192 = vmatpush2.msra.mxu0 0.0
  %193 = vmatprep.subr.mxu0 0.0
  %194 = vmatpush2.msra.mxu0 0.0
  %195 = vmatprep.subr.mxu0 0.0
  %196 = vmatpush2.msra.mxu0 0.0
  %197 = vmatprep.subr.mxu0 0.0
  %198 = vmatpush2.msra.mxu0 0.0
  %199 = vmatprep.subr.mxu0 0.0
  %200 = vmatpush2.msra.mxu0 0.0
  %201 = vmatprep.subr.mxu0 0.0
  %202 = vmatpush2.msra.mxu0 0.0
  %203 = vmatprep.subr.mxu0 0.0
  %204 = vmatpush2.msra.mxu0 0.0
  %205 = vmatprep.subr.mxu0 0.0
  %206 = vmatpush2.msra.mxu0 0.0
  %207 = vmatprep.subr.mxu0 0.0
  %208 = vmatpush2.msra.mxu0 0.0
  %209 = vmatprep.subr.mxu0 0.0
  %210 = vmatpush2.msra.mxu0 0.0
  %211 = vmatprep.mubr.f32.mxu0 0.0
  %212 = vmatmul.mubr.f32.gmra.mxu0 %v141
  %v213 = vpop.f32.mrf.mxu0
  %v214 = vadd.f32 0.0, %v213
  %v215 = vpop.f32.mrf.mxu0
  %v216 = vadd.f32 0.0, %v215
  %217 = vdwg.mxu0
  %v218 = vadd.f32 %v144, %v214
  %v219 = vtanh.pop %v218
  %v220 = vadd.f32 %v219, 1.0
  %v221 = vadd.f32 %v145, %v216
  %v222 = vmul.f32 %v221, 0.5
  %v223 = vtanh.pop %v222
  %v224 = vadd.f32 %v223, 1.0
  %v225 = vmul.f32 %v224, 0.5
  %v226 = vmul.f32 %v225, %v141
  %v227 = vsub.f32 1.0, %v225
  %v228 = vmul.f32 %v220, %v141
  %v229 = vadd.f32 %v146, %v228
  %v230 = vtanh.pop %v229
  %v231 = vmul.f32 %v227, %v230
  %v232 = vadd.f32 %v226, %v231
  %s233 = scalar_lea.vmem %s3, 8
  %234 = vst [vmem:[%s233] sm:$0xff] %v232
  %s235 = scalar_lea.vmem %s0, 48
  %v236 = vld [vmem:[%s235] sm:$0xff]
  %v237 = vld [vmem:[%s235 + $0x8] sm:$0xff]
  %v238 = vld [vmem:[%s235 + $0x10] sm:$0xff]
  %239 = vmatprep.subr.mxu0 %v51
  %240 = vmatpush1.msra.mxu0 %v50
  %241 = vmatprep.subr.mxu0 %v49
  %242 = vmatpush1.msra.mxu0 %v48
  %243 = vmatprep.subr.mxu0 %v47
  %244 = vmatpush1.msra.mxu0 %v46
  %245 = vmatprep.subr.mxu0 %v45
  %246 = vmatpush1.msra.mxu0 %v44
  %247 = vmatprep.subr.mxu0 %v43
  %248 = vmatpush1.msra.mxu0 %v42
  %249 = vmatprep.subr.mxu0 %v41
  %250 = vmatpush1.msra.mxu0 %v40
  %251 = vmatprep.subr.mxu0 %v39
  %252 = vmatpush1.msra.mxu0 %v38
  %253 = vmatprep.subr.mxu0 %v37
  %254 = vmatpush1.msra.mxu0 %v36
  %255 = vmatprep.subr.mxu0 %v35
  %256 = vmatpush1.msra.mxu0 %v34
  %257 = vmatprep.subr.mxu0 %v33
  %258 = vmatpush1.msra.mxu0 %v32
  %259 = vmatprep.subr.mxu0 %v31
  %260 = vmatpush1.msra.mxu0 %v30
  %261 = vmatprep.subr.mxu0 %v29
  %262 = vmatpush1.msra.mxu0 %v28
  %263 = vmatprep.subr.mxu0 %v27
  %264 = vmatpush1.msra.mxu0 %v26
  %265 = vmatprep.subr.mxu0 %v25
  %266 = vmatpush1.msra.mxu0 %v24
  %267 = vmatprep.subr.mxu0 %v23
  %268 = vmatpush1.msra.mxu0 %v22
  %269 = vmatprep.subr.mxu0 %v21
  %270 = vmatpush1.msra.mxu0 %v20
  %271 = vmatprep.subr.mxu0 0.0
  %272 = vmatpush2.msra.mxu0 0.0
  %273 = vmatprep.subr.mxu0 0.0
  %274 = vmatpush2.msra.mxu0 0.0
  %275 = vmatprep.subr.mxu0 0.0
  %276 = vmatpush2.msra.mxu0 0.0
  %277 = vmatprep.subr.mxu0 0.0
  %278 = vmatpush2.msra.mxu0 0.0
  %279 = vmatprep.subr.mxu0 0.0
  %280 = vmatpush2.msra.mxu0 0.0
  %281 = vmatprep.subr.mxu0 0.0
  %282 = vmatpush2.msra.mxu0 0.0
  %283 = vmatprep.subr.mxu0 0.0
  %284 = vmatpush2.msra.mxu0 0.0
  %285 = vmatprep.subr.mxu0 0.0
  %286 = vmatpush2.msra.mxu0 0.0
  %287 = vmatprep.subr.mxu0 0.0
  %288 = vmatpush2.msra.mxu0 0.0
  %289 = vmatprep.subr.mxu0 0.0
  %290 = vmatpush2.msra.mxu0 0.0
  %291 = vmatprep.subr.mxu0 0.0
  %292 = vmatpush2.msra.mxu0 0.0
  %293 = vmatprep.subr.mxu0 0.0
  %294 = vmatpush2.msra.mxu0 0.0
  %295 = vmatprep.subr.mxu0 0.0
  %296 = vmatpush2.msra.mxu0 0.0
  %297 = vmatprep.subr.mxu0 0.0
  %298 = vmatpush2.msra.mxu0 0.0
  %299 = vmatprep.subr.mxu0 0.0
  %300 = vmatpush2.msra.mxu0 0.0
  %301 = vmatprep.subr.mxu0 0.0
  %302 = vmatpush2.msra.mxu0 0.0
  %303 = vmatprep.mubr.f32.mxu0 0.0
  %304 = vmatmul.mubr.f32.gmra.mxu0 %v232
  %v305 = vpop.f32.mrf.mxu0
  %v306 = vadd.f32 0.0, %v305
  %v307 = vpop.f32.mrf.mxu0
  %v308 = vadd.f32 0.0, %v307
  %309 = vdwg.mxu0
  %v310 = vadd.f32 %v236, %v306
  %v311 = vtanh.pop %v310
  %v312 = vadd.f32 %v311, 1.0
  %v313 = vadd.f32 %v237, %v308
  %v314 = vmul.f32 %v313, 0.5
  %v315 = vtanh.pop %v314
  %v316 = vadd.f32 %v315, 1.0
  %v317 = vmul.f32 %v316, 0.5
  %v318 = vmul.f32 %v317, %v232
  %v319 = vsub.f32 1.0, %v317
  %v320 = vmul.f32 %v312, %v232
  %v321 = vadd.f32 %v238, %v320
  %v322 = vtanh.pop %v321
  %v323 = vmul.f32 %v319, %v322
  %v324 = vadd.f32 %v318, %v323
  %s325 = scalar_lea.vmem %s3, 16
  %326 = vst [vmem:[%s325] sm:$0xff] %v324
  %s327 = scalar_lea.vmem %s0, 72
  %v328 = vld [vmem:[%s327] sm:$0xff]
  %v329 = vld [vmem:[%s327 + $0x8] sm:$0xff]
  %v330 = vld [vmem:[%s327 + $0x10] sm:$0xff]
  %331 = vmatprep.subr.mxu0 %v51
  %332 = vmatpush1.msra.mxu0 %v50
  %333 = vmatprep.subr.mxu0 %v49
  %334 = vmatpush1.msra.mxu0 %v48
  %335 = vmatprep.subr.mxu0 %v47
  %336 = vmatpush1.msra.mxu0 %v46
  %337 = vmatprep.subr.mxu0 %v45
  %338 = vmatpush1.msra.mxu0 %v44
  %339 = vmatprep.subr.mxu0 %v43
  %340 = vmatpush1.msra.mxu0 %v42
  %341 = vmatprep.subr.mxu0 %v41
  %342 = vmatpush1.msra.mxu0 %v40
  %343 = vmatprep.subr.mxu0 %v39
  %344 = vmatpush1.msra.mxu0 %v38
  %345 = vmatprep.subr.mxu0 %v37
  %346 = vmatpush1.msra.mxu0 %v36
  %347 = vmatprep.subr.mxu0 %v35
  %348 = vmatpush1.msra.mxu0 %v34
  %349 = vmatprep.subr.mxu0 %v33
  %350 = vmatpush1.msra.mxu0 %v32
  %351 = vmatprep.subr.mxu0 %v31
  %352 = vmatpush1.msra.mxu0 %v30
  %353 = vmatprep.subr.mxu0 %v29
  %354 = vmatpush1.msra.mxu0 %v28
  %355 = vmatprep.subr.mxu0 %v27
  %356 = vmatpush1.msra.mxu0 %v26
  %357 = vmatprep.subr.mxu0 %v25
  %358 = vmatpush1.msra.mxu0 %v24
  %359 = vmatprep.subr.mxu0 %v23
  %360 = vmatpush1.msra.mxu0 %v22
  %361 = vmatprep.subr.mxu0 %v21
  %362 = vmatpush1.msra.mxu0 %v20
  %363 = vmatprep.subr.mxu0 0.0
  %364 = vmatpush2.msra.mxu0 0.0
  %365 = vmatprep.subr.mxu0 0.0
  %366 = vmatpush2.msra.mxu0 0.0
  %367 = vmatprep.subr.mxu0 0.0
  %368 = vmatpush2.msra.mxu0 0.0
  %369 = vmatprep.subr.mxu0 0.0
  %370 = vmatpush2.msra.mxu0 0.0
  %371 = vmatprep.subr.mxu0 0.0
  %372 = vmatpush2.msra.mxu0 0.0
  %373 = vmatprep.subr.mxu0 0.0
  %374 = vmatpush2.msra.mxu0 0.0
  %375 = vmatprep.subr.mxu0 0.0
  %376 = vmatpush2.msra.mxu0 0.0
  %377 = vmatprep.subr.mxu0 0.0
  %378 = vmatpush2.msra.mxu0 0.0
  %379 = vmatprep.subr.mxu0 0.0
  %380 = vmatpush2.msra.mxu0 0.0
  %381 = vmatprep.subr.mxu0 0.0
  %382 = vmatpush2.msra.mxu0 0.0
  %383 = vmatprep.subr.mxu0 0.0
  %384 = vmatpush2.msra.mxu0 0.0
  %385 = vmatprep.subr.mxu0 0.0
  %386 = vmatpush2.msra.mxu0 0.0
  %387 = vmatprep.subr.mxu0 0.0
  %388 = vmatpush2.msra.mxu0 0.0
  %389 = vmatprep.subr.mxu0 0.0
  %390 = vmatpush2.msra.mxu0 0.0
  %391 = vmatprep.subr.mxu0 0.0
  %392 = vmatpush2.msra.mxu0 0.0
  %393 = vmatprep.subr.mxu0 0.0
  %394 = vmatpush2.msra.mxu0 0.0
  %395 = vmatprep.mubr.f32.mxu0 0.0
  %396 = vmatmul.mubr.f32.gmra.mxu0 %v324
  %v397 = vpop.f32.mrf.mxu0
  %v398 = vadd.f32 0.0, %v397
  %v399 = vpop.f32.mrf.mxu0
  %v400 = vadd.f32 0.0, %v399
  %401 = vdwg.mxu0
  %v402 = vadd.f32 %v328, %v398
  %v403 = vtanh.pop %v402
  %v404 = vadd.f32 %v403, 1.0
  %v405 = vadd.f32 %v329, %v400
  %v406 = vmul.f32 %v405, 0.5
  %v407 = vtanh.pop %v406
  %v408 = vadd.f32 %v407, 1.0
  %v409 = vmul.f32 %v408, 0.5
  %v410 = vmul.f32 %v409, %v324
  %v411 = vsub.f32 1.0, %v409
  %v412 = vmul.f32 %v404, %v324
  %v413 = vadd.f32 %v330, %v412
  %v414 = vtanh.pop %v413
  %v415 = vmul.f32 %v411, %v414
  %v416 = vadd.f32 %v410, %v415
  %s417 = scalar_lea.vmem %s3, 24
  %418 = vst [vmem:[%s417] sm:$0xff] %v416
  %s419 = scalar_lea.vmem %s0, 96
  %v420 = vld [vmem:[%s419] sm:$0xff]
  %v421 = vld [vmem:[%s419 + $0x8] sm:$0xff]
  %v422 = vld [vmem:[%s419 + $0x10] sm:$0xff]
  %423 = vmatprep.subr.mxu0 %v51
  %424 = vmatpush1.msra.mxu0 %v50
  %425 = vmatprep.subr.mxu0 %v49
  %426 = vmatpush1.msra.mxu0 %v48
  %427 = vmatprep.subr.mxu0 %v47
  %428 = vmatpush1.msra.mxu0 %v46
  %429 = vmatprep.subr.mxu0 %v45
  %430 = vmatpush1.msra.mxu0 %v44
  %431 = vmatprep.subr.mxu0 %v43
  %432 = vmatpush1.msra.mxu0 %v42
  %433 = vmatprep.subr.mxu0 %v41
  %434 = vmatpush1.msra.mxu0 %v40
  %435 = vmatprep.subr.mxu0 %v39
  %436 = vmatpush1.msra.mxu0 %v38
  %437 = vmatprep.subr.mxu0 %v37
  %438 = vmatpush1.msra.mxu0 %v36
  %439 = vmatprep.subr.mxu0 %v35
  %440 = vmatpush1.msra.mxu0 %v34
  %441 = vmatprep.subr.mxu0 %v33
  %442 = vmatpush1.msra.mxu0 %v32
  %443 = vmatprep.subr.mxu0 %v31
  %444 = vmatpush1.msra.mxu0 %v30
  %445 = vmatprep.subr.mxu0 %v29
  %446 = vmatpush1.msra.mxu0 %v28
  %447 = vmatprep.subr.mxu0 %v27
  %448 = vmatpush1.msra.mxu0 %v26
  %449 = vmatprep.subr.mxu0 %v25
  %450 = vmatpush1.msra.mxu0 %v24
  %451 = vmatprep.subr.mxu0 %v23
  %452 = vmatpush1.msra.mxu0 %v22
  %453 = vmatprep.subr.mxu0 %v21
  %454 = vmatpush1.msra.mxu0 %v20
  %455 = vmatprep.subr.mxu0 0.0
  %456 = vmatpush2.msra.mxu0 0.0
  %457 = vmatprep.subr.mxu0 0.0
  %458 = vmatpush2.msra.mxu0 0.0
  %459 = vmatprep.subr.mxu0 0.0
  %460 = vmatpush2.msra.mxu0 0.0
  %461 = vmatprep.subr.mxu0 0.0
  %462 = vmatpush2.msra.mxu0 0.0
  %463 = vmatprep.subr.mxu0 0.0
  %464 = vmatpush2.msra.mxu0 0.0
  %465 = vmatprep.subr.mxu0 0.0
  %466 = vmatpush2.msra.mxu0 0.0
  %467 = vmatprep.subr.mxu0 0.0
  %468 = vmatpush2.msra.mxu0 0.0
  %469 = vmatprep.subr.mxu0 0.0
  %470 = vmatpush2.msra.mxu0 0.0
  %471 = vmatprep.subr.mxu0 0.0
  %472 = vmatpush2.msra.mxu0 0.0
  %473 = vmatprep.subr.mxu0 0.0
  %474 = vmatpush2.msra.mxu0 0.0
  %475 = vmatprep.subr.mxu0 0.0
  %476 = vmatpush2.msra.mxu0 0.0
  %477 = vmatprep.subr.mxu0 0.0
  %478 = vmatpush2.msra.mxu0 0.0
  %479 = vmatprep.subr.mxu0 0.0
  %480 = vmatpush2.msra.mxu0 0.0
  %481 = vmatprep.subr.mxu0 0.0
  %482 = vmatpush2.msra.mxu0 0.0
  %483 = vmatprep.subr.mxu0 0.0
  %484 = vmatpush2.msra.mxu0 0.0
  %485 = vmatprep.subr.mxu0 0.0
  %486 = vmatpush2.msra.mxu0 0.0
  %487 = vmatprep.mubr.f32.mxu0 0.0
  %488 = vmatmul.mubr.f32.gmra.mxu0 %v416
  %v489 = vpop.f32.mrf.mxu0
  %v490 = vadd.f32 0.0, %v489
  %v491 = vpop.f32.mrf.mxu0
  %v492 = vadd.f32 0.0, %v491
  %493 = vdwg.mxu0
  %v494 = vadd.f32 %v420, %v490
  %v495 = vtanh.pop %v494
  %v496 = vadd.f32 %v495, 1.0
  %v497 = vadd.f32 %v421, %v492
  %v498 = vmul.f32 %v497, 0.5
  %v499 = vtanh.pop %v498
  %v500 = vadd.f32 %v499, 1.0
  %v501 = vmul.f32 %v500, 0.5
  %v502 = vmul.f32 %v501, %v416
  %v503 = vsub.f32 1.0, %v501
  %v504 = vmul.f32 %v496, %v416
  %v505 = vadd.f32 %v422, %v504
  %v506 = vtanh.pop %v505
  %v507 = vmul.f32 %v503, %v506
  %v508 = vadd.f32 %v502, %v507
  %s509 = scalar_lea.vmem %s3, 32
  %510 = vst [vmem:[%s509] sm:$0xff] %v508
  %s511 = scalar_lea.vmem %s0, 120
  %v512 = vld [vmem:[%s511] sm:$0xff]
  %v513 = vld [vmem:[%s511 + $0x8] sm:$0xff]
  %v514 = vld [vmem:[%s511 + $0x10] sm:$0xff]
  %515 = vmatprep.subr.mxu0 %v51
  %516 = vmatpush1.msra.mxu0 %v50
  %517 = vmatprep.subr.mxu0 %v49
  %518 = vmatpush1.msra.mxu0 %v48
  %519 = vmatprep.subr.mxu0 %v47
  %520 = vmatpush1.msra.mxu0 %v46
  %521 = vmatprep.subr.mxu0 %v45
  %522 = vmatpush1.msra.mxu0 %v44
  %523 = vmatprep.subr.mxu0 %v43
  %524 = vmatpush1.msra.mxu0 %v42
  %525 = vmatprep.subr.mxu0 %v41
  %526 = vmatpush1.msra.mxu0 %v40
  %527 = vmatprep.subr.mxu0 %v39
  %528 = vmatpush1.msra.mxu0 %v38
  %529 = vmatprep.subr.mxu0 %v37
  %530 = vmatpush1.msra.mxu0 %v36
  %531 = vmatprep.subr.mxu0 %v35
  %532 = vmatpush1.msra.mxu0 %v34
  %533 = vmatprep.subr.mxu0 %v33
  %534 = vmatpush1.msra.mxu0 %v32
  %535 = vmatprep.subr.mxu0 %v31
  %536 = vmatpush1.msra.mxu0 %v30
  %537 = vmatprep.subr.mxu0 %v29
  %538 = vmatpush1.msra.mxu0 %v28
  %539 = vmatprep.subr.mxu0 %v27
  %540 = vmatpush1.msra.mxu0 %v26
  %541 = vmatprep.subr.mxu0 %v25
  %542 = vmatpush1.msra.mxu0 %v24
  %543 = vmatprep.subr.mxu0 %v23
  %544 = vmatpush1.msra.mxu0 %v22
  %545 = vmatprep.subr.mxu0 %v21
  %546 = vmatpush1.msra.mxu0 %v20
  %547 = vmatprep.subr.mxu0 0.0
  %548 = vmatpush2.msra.mxu0 0.0
  %549 = vmatprep.subr.mxu0 0.0
  %550 = vmatpush2.msra.mxu0 0.0
  %551 = vmatprep.subr.mxu0 0.0
  %552 = vmatpush2.msra.mxu0 0.0
  %553 = vmatprep.subr.mxu0 0.0
  %554 = vmatpush2.msra.mxu0 0.0
  %555 = vmatprep.subr.mxu0 0.0
  %556 = vmatpush2.msra.mxu0 0.0
  %557 = vmatprep.subr.mxu0 0.0
  %558 = vmatpush2.msra.mxu0 0.0
  %559 = vmatprep.subr.mxu0 0.0
  %560 = vmatpush2.msra.mxu0 0.0
  %561 = vmatprep.subr.mxu0 0.0
  %562 = vmatpush2.msra.mxu0 0.0
  %563 = vmatprep.subr.mxu0 0.0
  %564 = vmatpush2.msra.mxu0 0.0
  %565 = vmatprep.subr.mxu0 0.0
  %566 = vmatpush2.msra.mxu0 0.0
  %567 = vmatprep.subr.mxu0 0.0
  %568 = vmatpush2.msra.mxu0 0.0
  %569 = vmatprep.subr.mxu0 0.0
  %570 = vmatpush2.msra.mxu0 0.0
  %571 = vmatprep.subr.mxu0 0.0
  %572 = vmatpush2.msra.mxu0 0.0
  %573 = vmatprep.subr.mxu0 0.0
  %574 = vmatpush2.msra.mxu0 0.0
  %575 = vmatprep.subr.mxu0 0.0
  %576 = vmatpush2.msra.mxu0 0.0
  %577 = vmatprep.subr.mxu0 0.0
  %578 = vmatpush2.msra.mxu0 0.0
  %579 = vmatprep.mubr.f32.mxu0 0.0
  %580 = vmatmul.mubr.f32.gmra.mxu0 %v508
  %v581 = vpop.f32.mrf.mxu0
  %v582 = vadd.f32 0.0, %v581
  %v583 = vpop.f32.mrf.mxu0
  %v584 = vadd.f32 0.0, %v583
  %585 = vdwg.mxu0
  %v586 = vadd.f32 %v512, %v582
  %v587 = vtanh.pop %v586
  %v588 = vadd.f32 %v587, 1.0
  %v589 = vadd.f32 %v513, %v584
  %v590 = vmul.f32 %v589, 0.5
  %v591 = vtanh.pop %v590
  %v592 = vadd.f32 %v591, 1.0
  %v593 = vmul.f32 %v592, 0.5
  %v594 = vmul.f32 %v593, %v508
  %v595 = vsub.f32 1.0, %v593
  %v596 = vmul.f32 %v588, %v508
  %v597 = vadd.f32 %v514, %v596
  %v598 = vtanh.pop %v597
  %v599 = vmul.f32 %v595, %v598
  %v600 = vadd.f32 %v594, %v599
  %s601 = scalar_lea.vmem %s3, 40
  %602 = vst [vmem:[%s601] sm:$0xff] %v600
  %s603 = scalar_lea.vmem %s0, 144
  %v604 = vld [vmem:[%s603] sm:$0xff]
  %v605 = vld [vmem:[%s603 + $0x8] sm:$0xff]
  %v606 = vld [vmem:[%s603 + $0x10] sm:$0xff]
  %607 = vmatprep.subr.mxu0 %v51
  %608 = vmatpush1.msra.mxu0 %v50
  %609 = vmatprep.subr.mxu0 %v49
  %610 = vmatpush1.msra.mxu0 %v48
  %611 = vmatprep.subr.mxu0 %v47
  %612 = vmatpush1.msra.mxu0 %v46
  %613 = vmatprep.subr.mxu0 %v45
  %614 = vmatpush1.msra.mxu0 %v44
  %615 = vmatprep.subr.mxu0 %v43
  %616 = vmatpush1.msra.mxu0 %v42
  %617 = vmatprep.subr.mxu0 %v41
  %618 = vmatpush1.msra.mxu0 %v40
  %619 = vmatprep.subr.mxu0 %v39
  %620 = vmatpush1.msra.mxu0 %v38
  %621 = vmatprep.subr.mxu0 %v37
  %622 = vmatpush1.msra.mxu0 %v36
  %623 = vmatprep.subr.mxu0 %v35
  %624 = vmatpush1.msra.mxu0 %v34
  %625 = vmatprep.subr.mxu0 %v33
  %626 = vmatpush1.msra.mxu0 %v32
  %627 = vmatprep.subr.mxu0 %v31
  %628 = vmatpush1.msra.mxu0 %v30
  %629 = vmatprep.subr.mxu0 %v29
  %630 = vmatpush1.msra.mxu0 %v28
  %631 = vmatprep.subr.mxu0 %v27
  %632 = vmatpush1.msra.mxu0 %v26
  %633 = vmatprep.subr.mxu0 %v25
  %634 = vmatpush1.msra.mxu0 %v24
  %635 = vmatprep.subr.mxu0 %v23
  %636 = vmatpush1.msra.mxu0 %v22
  %637 = vmatprep.subr.mxu0 %v21
  %638 = vmatpush1.msra.mxu0 %v20
  %639 = vmatprep.subr.mxu0 0.0
  %640 = vmatpush2.msra.mxu0 0.0
  %641 = vmatprep.subr.mxu0 0.0
  %642 = vmatpush2.msra.mxu0 0.0
  %643 = vmatprep.subr.mxu0 0.0
  %644 = vmatpush2.msra.mxu0 0.0
  %645 = vmatprep.subr.mxu0 0.0
  %646 = vmatpush2.msra.mxu0 0.0
  %647 = vmatprep.subr.mxu0 0.0
  %648 = vmatpush2.msra.mxu0 0.0
  %649 = vmatprep.subr.mxu0 0.0
  %650 = vmatpush2.msra.mxu0 0.0
  %651 = vmatprep.subr.mxu0 0.0
  %652 = vmatpush2.msra.mxu0 0.0
  %653 = vmatprep.subr.mxu0 0.0
  %654 = vmatpush2.msra.mxu0 0.0
  %655 = vmatprep.subr.mxu0 0.0
  %656 = vmatpush2.msra.mxu0 0.0
  %657 = vmatprep.subr.mxu0 0.0
  %658 = vmatpush2.msra.mxu0 0.0
  %659 = vmatprep.subr.mxu0 0.0
  %660 = vmatpush2.msra.mxu0 0.0
  %661 = vmatprep.subr.mxu0 0.0
  %662 = vmatpush2.msra.mxu0 0.0
  %663 = vmatprep.subr.mxu0 0.0
  %664 = vmatpush2.msra.mxu0 0.0
  %665 = vmatprep.subr.mxu0 0.0
  %666 = vmatpush2.msra.mxu0 0.0
  %667 = vmatprep.subr.mxu0 0.0
  %668 = vmatpush2.msra.mxu0 0.0
  %669 = vmatprep.subr.mxu0 0.0
  %670 = vmatpush2.msra.mxu0 0.0
  %671 = vmatprep.mubr.f32.mxu0 0.0
  %672 = vmatmul.mubr.f32.gmra.mxu0 %v600
  %v673 = vpop.f32.mrf.mxu0
  %v674 = vadd.f32 0.0, %v673
  %v675 = vpop.f32.mrf.mxu0
  %v676 = vadd.f32 0.0, %v675
  %677 = vdwg.mxu0
  %v678 = vadd.f32 %v604, %v674
  %v679 = vtanh.pop %v678
  %v680 = vadd.f32 %v679, 1.0
  %v681 = vadd.f32 %v605, %v676
  %v682 = vmul.f32 %v681, 0.5
  %v683 = vtanh.pop %v682
  %v684 = vadd.f32 %v683, 1.0
  %v685 = vmul.f32 %v684, 0.5
  %v686 = vmul.f32 %v685, %v600
  %v687 = vsub.f32 1.0, %v685
  %v688 = vmul.f32 %v680, %v600
  %v689 = vadd.f32 %v606, %v688
  %v690 = vtanh.pop %v689
  %v691 = vmul.f32 %v687, %v690
  %v692 = vadd.f32 %v686, %v691
  %s693 = scalar_lea.vmem %s3, 48
  %694 = vst [vmem:[%s693] sm:$0xff] %v692
  %s695 = scalar_lea.vmem %s0, 168
  %v696 = vld [vmem:[%s695] sm:$0xff]
  %v697 = vld [vmem:[%s695 + $0x8] sm:$0xff]
  %v698 = vld [vmem:[%s695 + $0x10] sm:$0xff]
  %699 = vmatprep.subr.mxu0 %v51
  %700 = vmatpush1.msra.mxu0 %v50
  %701 = vmatprep.subr.mxu0 %v49
  %702 = vmatpush1.msra.mxu0 %v48
  %703 = vmatprep.subr.mxu0 %v47
  %704 = vmatpush1.msra.mxu0 %v46
  %705 = vmatprep.subr.mxu0 %v45
  %706 = vmatpush1.msra.mxu0 %v44
  %707 = vmatprep.subr.mxu0 %v43
  %708 = vmatpush1.msra.mxu0 %v42
  %709 = vmatprep.subr.mxu0 %v41
  %710 = vmatpush1.msra.mxu0 %v40
  %711 = vmatprep.subr.mxu0 %v39
  %712 = vmatpush1.msra.mxu0 %v38
  %713 = vmatprep.subr.mxu0 %v37
  %714 = vmatpush1.msra.mxu0 %v36
  %715 = vmatprep.subr.mxu0 %v35
  %716 = vmatpush1.msra.mxu0 %v34
  %717 = vmatprep.subr.mxu0 %v33
  %718 = vmatpush1.msra.mxu0 %v32
  %719 = vmatprep.subr.mxu0 %v31
  %720 = vmatpush1.msra.mxu0 %v30
  %721 = vmatprep.subr.mxu0 %v29
  %722 = vmatpush1.msra.mxu0 %v28
  %723 = vmatprep.subr.mxu0 %v27
  %724 = vmatpush1.msra.mxu0 %v26
  %725 = vmatprep.subr.mxu0 %v25
  %726 = vmatpush1.msra.mxu0 %v24
  %727 = vmatprep.subr.mxu0 %v23
  %728 = vmatpush1.msra.mxu0 %v22
  %729 = vmatprep.subr.mxu0 %v21
  %730 = vmatpush1.msra.mxu0 %v20
  %731 = vmatprep.subr.mxu0 0.0
  %732 = vmatpush2.msra.mxu0 0.0
  %733 = vmatprep.subr.mxu0 0.0
  %734 = vmatpush2.msra.mxu0 0.0
  %735 = vmatprep.subr.mxu0 0.0
  %736 = vmatpush2.msra.mxu0 0.0
  %737 = vmatprep.subr.mxu0 0.0
  %738 = vmatpush2.msra.mxu0 0.0
  %739 = vmatprep.subr.mxu0 0.0
  %740 = vmatpush2.msra.mxu0 0.0
  %741 = vmatprep.subr.mxu0 0.0
  %742 = vmatpush2.msra.mxu0 0.0
  %743 = vmatprep.subr.mxu0 0.0
  %744 = vmatpush2.msra.mxu0 0.0
  %745 = vmatprep.subr.mxu0 0.0
  %746 = vmatpush2.msra.mxu0 0.0
  %747 = vmatprep.subr.mxu0 0.0
  %748 = vmatpush2.msra.mxu0 0.0
  %749 = vmatprep.subr.mxu0 0.0
  %750 = vmatpush2.msra.mxu0 0.0
  %751 = vmatprep.subr.mxu0 0.0
  %752 = vmatpush2.msra.mxu0 0.0
  %753 = vmatprep.subr.mxu0 0.0
  %754 = vmatpush2.msra.mxu0 0.0
  %755 = vmatprep.subr.mxu0 0.0
  %756 = vmatpush2.msra.mxu0 0.0
  %757 = vmatprep.subr.mxu0 0.0
  %758 = vmatpush2.msra.mxu0 0.0
  %759 = vmatprep.subr.mxu0 0.0
  %760 = vmatpush2.msra.mxu0 0.0
  %761 = vmatprep.subr.mxu0 0.0
  %762 = vmatpush2.msra.mxu0 0.0
  %763 = vmatprep.mubr.f32.mxu0 0.0
  %764 = vmatmul.mubr.f32.gmra.mxu0 %v692
  %v765 = vpop.f32.mrf.mxu0
  %v766 = vadd.f32 0.0, %v765
  %v767 = vpop.f32.mrf.mxu0
  %v768 = vadd.f32 0.0, %v767
  %769 = vdwg.mxu0
  %v770 = vadd.f32 %v696, %v766
  %v771 = vtanh.pop %v770
  %v772 = vadd.f32 %v771, 1.0
  %v773 = vadd.f32 %v697, %v768
  %v774 = vmul.f32 %v773, 0.5
  %v775 = vtanh.pop %v774
  %v776 = vadd.f32 %v775, 1.0
  %v777 = vmul.f32 %v776, 0.5
  %v778 = vmul.f32 %v777, %v692
  %v779 = vsub.f32 1.0, %v777
  %v780 = vmul.f32 %v772, %v692
  %v781 = vadd.f32 %v698, %v780
  %v782 = vtanh.pop %v781
  %v783 = vmul.f32 %v779, %v782
  %v784 = vadd.f32 %v778, %v783
  %s785 = scalar_lea.vmem %s3, 56
  %786 = vst [vmem:[%s785] sm:$0xff] %v784
  %787 = vst [vmem:[#allocation2] sm:$0xff] %v784
  // Predicated region
  $region18: #{nbrc_forward.1} parent=0 // pred_check
    _
  $region19: #{nbrc_forward.1} parent=0 // pred_check_branch
    %789 = sbr.rel (0) target = $region21
  $region20: #{nbrc_forward.1} parent=0 // pred_region
    _
  $region21: #{nbrc_forward.1} parent=0 // pred_fallthru
    _
  // Predicated region
  $region22: #{nbrc_forward.1} parent=0 // pred_check
    _
  $region23: #{nbrc_forward.1} parent=0 // pred_check_branch
    %791 = sbr.rel (0) target = $region25
  $region24: #{nbrc_forward.1} parent=0 // pred_region
    _
  $region25: #{nbrc_forward.1} parent=0 // pred_fallthru
    _

</llo_original>
